<compile_context>
chip_gen: v7x
topology: tpu7x:2x2x1
jax: 0.10.0
libtpu: 0.0.40
codegen_flags: <defaults>
</compile_context>

<pallas_src>
import functools
import math

import jax
import jax.numpy as jnp
from jax import lax
from jax.experimental import pallas as pl
from jax.experimental.pallas import tpu as pltpu

LANES = 128
SUBLANES = 8
ALIGN = SUBLANES * LANES          # 1024-element prefix alignment


def _cdiv(a, b):
    return -(-a // b)


def _chip_config():
    """(num_parallel_cores, max_block_rows, vmem_limit_bytes) per generation."""
    try:
        kind = jax.devices()[0].device_kind.lower()
    except Exception:  # pragma: no cover - defensive
        kind = ""
    if "7" in kind:
        # v7x: 2 TensorCores/chip but only 64 MiB VMEM per TC -> cap tiles.
        return 2, 4096, 32 * 1024 * 1024
    if "v5" in kind or "v6" in kind:
        # single-TC chips with 128 MiB VMEM: go big to amortize grid overhead.
        return 1, 8192, 64 * 1024 * 1024
    return 1, 2048, 32 * 1024 * 1024


NUM_PARALLEL, MAX_BLOCK_ROWS, VMEM_LIMIT_BYTES = _chip_config()


# ---------------------------------------------------------------------------
# Kernels
# ---------------------------------------------------------------------------
def _fold(vals32, block_rows):
    """Fold a (block_rows, 128) f32 tile into an (8, 128) partial sum."""
    return vals32.reshape(block_rows // SUBLANES, SUBLANES, LANES).sum(axis=0)


def _tail_mask(block_rows, tail_elems):
    """Block-local validity mask for the single ragged boundary block."""
    row = lax.broadcasted_iota(jnp.int32, (block_rows, LANES), 0)
    lane = lax.broadcasted_iota(jnp.int32, (block_rows, LANES), 1)
    return (row * LANES + lane) < tail_elems


def _sq_diff_sum_kernel(x_ref, y_ref, o_ref, *, block_rows, blocks_per_core,
                        total_blocks, tail_elems):
    """Accumulates (x - y)^2 into a per-core resident (8, 128) partial sum."""
    p = pl.program_id(0)
    j = pl.program_id(1)
    gb = p * blocks_per_core + j          # global block id (may be clamped dup)
    boundary = total_blocks - 1           # the only possibly-partial block

    @pl.when(j == 0)
    def _():
        o_ref[...] = jnp.zeros_like(o_ref)

    def accumulate(mask):
        d = x_ref[...].astype(jnp.float32) - y_ref[...].astype(jnp.float32)
        if mask is not None:
            d = jnp.where(mask, d, 0.0)
        o_ref[...] += _fold(d * d, block_rows)

    if tail_elems == block_rows * LANES:
        # No ragged boundary: every real block is full; skip clamped dupes.
        @pl.when(gb < total_blocks)
        def _():
            accumulate(None)
    else:
        @pl.when(gb < boundary)
        def _():
            accumulate(None)          # fast path: interior, fully-valid block

        @pl.when(gb == boundary)
        def _():
            accumulate(_tail_mask(block_rows, tail_elems))  # slow path


def _log2_sum_kernel(l_ref, o_ref, *, block_rows, blocks_per_core,
                     total_blocks, tail_elems):
    """Accumulates log2(likelihood) into a per-core resident (8, 128) sum."""
    p = pl.program_id(0)
    j = pl.program_id(1)
    gb = p * blocks_per_core + j
    boundary = total_blocks - 1

    @pl.when(j == 0)
    def _():
        o_ref[...] = jnp.zeros_like(o_ref)

    def accumulate(mask):
        v = l_ref[...].astype(jnp.float32)
        if mask is not None:
            v = jnp.where(mask, v, 1.0)   # log2(1) == 0 -> no inf/nan produced
        o_ref[...] += _fold(jnp.log2(v), block_rows)

    if tail_elems == block_rows * LANES:
        @pl.when(gb < total_blocks)
        def _():
            accumulate(None)
    else:
        @pl.when(gb < boundary)
        def _():
            accumulate(None)

        @pl.when(gb == boundary)
        def _():
            accumulate(_tail_mask(block_rows, tail_elems))


# ---------------------------------------------------------------------------
# Wrappers
# ---------------------------------------------------------------------------
def _reduction_call(kernel_fn, slabs, max_block_rows=None):
    """Fused pipelined sum-reduction over one or two (rows, 128) slabs.

    `rows` must be a multiple of 8.  Returns the scalar sum (the tiny
    (num_parallel*8, 128) partial is folded in JAX)."""
    rows = slabs[0].shape[0]
    assert rows % SUBLANES == 0
    block_rows = min(max_block_rows or MAX_BLOCK_ROWS, rows)
    total_blocks = _cdiv(rows, block_rows)
    num_parallel = min(NUM_PARALLEL, total_blocks)      # drop split if tiny
    blocks_per_core = _cdiv(total_blocks, num_parallel)
    block_elems = block_rows * LANES
    tail_elems = rows * LANES - (total_blocks - 1) * block_elems

    def in_index_map(p, j):
        # Clamp so the edge/duplicate block DMA never runs past the slab; the
        # kernel skips the duplicated block's accumulation with pl.when.
        return (jnp.minimum(p * blocks_per_core + j, total_blocks - 1), 0)

    kernel = functools.partial(
        kernel_fn, block_rows=block_rows, blocks_per_core=blocks_per_core,
        total_blocks=total_blocks, tail_elems=tail_elems)

    partials = pl.pallas_call(
        kernel,
        out_shape=jax.ShapeDtypeStruct((num_parallel * SUBLANES, LANES),
                                       jnp.float32),
        grid=(num_parallel, blocks_per_core),
        in_specs=[pl.BlockSpec((block_rows, LANES), in_index_map)
                  for _ in slabs],
        out_specs=pl.BlockSpec((SUBLANES, LANES), lambda p, j: (p, 0)),
        compiler_params=pltpu.CompilerParams(
            dimension_semantics=("parallel", "arbitrary"),
            vmem_limit_bytes=VMEM_LIMIT_BYTES,
        ),
    )(*slabs)
    return jnp.sum(partials)


def _split_flat(flat):
    """Split a flat 1-D array into a free-reshape, lane/sublane-aligned
    (rows, 128) slab plus a (<1024-element) ragged tail.  No full-tensor pad
    or copy when the size is already 1024-aligned (the common case)."""
    n = flat.shape[0]
    main = (n // ALIGN) * ALIGN
    if main == 0:
        return None, flat
    if main == n:
        return flat.reshape(main // LANES, LANES), None
    return flat[:main].reshape(main // LANES, LANES), flat[main:]


def _sum_sq_diff(x, y):
    """sum((x - y)^2) over all elements."""
    xf = x.reshape(-1)
    yf = y.reshape(-1)
    x_slab, x_tail = _split_flat(xf)
    y_slab, y_tail = _split_flat(yf)
    total = jnp.float32(0.0)
    if x_slab is not None:
        total = total + _reduction_call(_sq_diff_sum_kernel, [x_slab, y_slab])
    if x_tail is not None:
        d = x_tail.astype(jnp.float32) - y_tail.astype(jnp.float32)
        total = total + jnp.sum(d * d)
    return total


def _sum_log2(l):
    """sum(log2(l)) over all elements of a single likelihood tensor."""
    slab, tail = _split_flat(l.reshape(-1))
    total = jnp.float32(0.0)
    if slab is not None:
        total = total + _reduction_call(_log2_sum_kernel, [slab])
    if tail is not None:
        total = total + jnp.sum(jnp.log2(tail.astype(jnp.float32)))
    return total


def rate_distortion_loss(output, target, lmbda=0.01):
    """JAX/Pallas equivalent of RateDistortionLoss.forward.

    output: dict with
        'x_hat':        (N, C, H, W) reconstruction
        'likelihoods':  dict name -> arbitrary-shaped positive tensors
    target: (N, C, H, W)
    """
    N, _, H, W = target.shape
    num_pixels = N * H * W

    # mse_loss = mean((x_hat - target)^2)   (nn.MSELoss default: mean over all)
    sq_sum = _sum_sq_diff(output["x_hat"], target)
    mse_loss = sq_sum / jnp.float32(target.size)

    # bpp_loss = sum_k sum(ln l_k) / (-ln(2) * P) == sum_k sum(log2 l_k) / (-P)
    likelihoods = list(output["likelihoods"].values())
    if likelihoods:
        log2_sum = sum(_sum_log2(l) for l in likelihoods)
        bpp_loss = log2_sum / jnp.float32(-num_pixels)
    else:
        bpp_loss = jnp.float32(0.0)

    loss = lmbda * (255.0 ** 2) * mse_loss + bpp_loss
    return {"bpp_loss": bpp_loss, "mse_loss": mse_loss, "loss": loss}


# ---------------------------------------------------------------------------
# Main
# ---------------------------------------------------------------------------
def _reference(output, target, lmbda):
    N, _, H, W = target.shape
    num_pixels = N * H * W
    ref_mse = jnp.mean((output["x_hat"] - target) ** 2)
    ref_bpp = sum(jnp.sum(jnp.log(l)) for l in output["likelihoods"].values())
    ref_bpp = ref_bpp / (-math.log(2) * num_pixels)
    ref_loss = lmbda * 255.0 ** 2 * ref_mse + ref_bpp
    return ref_mse, ref_bpp, ref_loss


def _check(out, output, target, lmbda):
    ref_mse, ref_bpp, ref_loss = _reference(output, target, lmbda)
    assert jnp.allclose(out["mse_loss"], ref_mse, rtol=1e-5, atol=1e-6)
    assert jnp.allclose(out["bpp_loss"], ref_bpp, rtol=1e-5, atol=1e-6)
    assert jnp.allclose(out["loss"], ref_loss, rtol=1e-5, atol=1e-6)


if __name__ == "__main__":
    lmbda = 0.01
    loss_fn = jax.jit(lambda o, t: rate_distortion_loss(o, t, lmbda=lmbda))

    key = jax.random.PRNGKey(0)
    keys = jax.random.split(key, 8)

    # --- Test 1: small shapes (ragged tails + tiny all-jnp likelihoods) ------
    N, C, H, W = 2, 3, 16, 16
    target = jax.random.uniform(keys[0], (N, C, H, W), jnp.float32)
    x_hat = target + 0.05 * jax.random.normal(keys[1], (N, C, H, W), jnp.float32)
    lik_y = jax.random.uniform(keys[2], (N, 4, 4, 4), jnp.float32,
                               minval=1e-3, maxval=1.0)
    lik_z = jax.random.uniform(keys[3], (N, 4, 2, 2), jnp.float32,
                               minval=1e-3, maxval=1.0)
    output = {"x_hat": x_hat, "likelihoods": {"y": lik_y, "z": lik_z}}

    out = loss_fn(output, target)
    out = jax.tree_util.tree_map(jax.block_until_ready, out)
    _check(out, output, target, lmbda)

    # --- Test 2: larger, lane/sublane-aligned shapes (free-reshape path) -----
    N2, C2, H2, W2 = 2, 3, 128, 128
    target2 = jax.random.uniform(keys[4], (N2, C2, H2, W2), jnp.float32)
    x_hat2 = target2 + 0.05 * jax.random.normal(keys[5], (N2, C2, H2, W2),
                                                jnp.float32)
    lik_y2 = jax.random.uniform(keys[6], (N2, 32, 16, 16), jnp.float32,
                                minval=1e-3, maxval=1.0)
    lik_z2 = jax.random.uniform(keys[7], (N2, 8, 8, 8), jnp.float32,
                                minval=1e-3, maxval=1.0)
    output2 = {"x_hat": x_hat2, "likelihoods": {"y": lik_y2, "z": lik_z2}}

    out2 = loss_fn(output2, target2)
    out2 = jax.tree_util.tree_map(jax.block_until_ready, out2)
    _check(out2, output2, target2, lmbda)

    # --- Test 3: multi-block grid + masked ragged boundary + parallel split --
    rows = 40                                    # 3 blocks of 16 rows, last ragged
    a = jax.random.normal(keys[0], (rows, LANES), jnp.float32)
    b = jax.random.normal(keys[1], (rows, LANES), jnp.float32)
    got_sq = _reduction_call(_sq_diff_sum_kernel, [a, b], max_block_rows=16)
    got_sq = jax.block_until_ready(got_sq)
    assert jnp.allclose(got_sq, jnp.sum((a - b) ** 2), rtol=1e-5, atol=1e-4)

    c = jax.random.uniform(keys[2], (rows, LANES), jnp.float32,
                           minval=1e-3, maxval=1.0)
    got_lg = _reduction_call(_log2_sum_kernel, [c], max_block_rows=16)
    got_lg = jax.block_until_ready(got_lg)
    assert jnp.allclose(got_lg, jnp.sum(jnp.log2(c)), rtol=1e-5, atol=1e-3)

    print("KERNEL_OK")
</pallas_src>

<mosaic_0001>
module attributes {stable_mosaic.version = 11 : i64} {
  func.func @_sq_diff_sum_kernel(%arg0: i32, %arg1: i32, %arg2: memref<8x128xf32, #tpu.memory_space<vmem>>, %arg3: memref<8x128xf32, #tpu.memory_space<vmem>>, %arg4: memref<8x128xf32, #tpu.memory_space<vmem>>) attributes {dimension_semantics = [#tpu.dimension_semantics<parallel>, #tpu.dimension_semantics<arbitrary>], iteration_bounds = array<i64: 1, 1>, scalar_prefetch = 0 : i64, scratch_operands = 0 : i64, tpu.core_type = #tpu.core_type<tc>, window_params = [{transform_indices = @transform_0, window_bounds = array<i64: 8, 128>}, {transform_indices = @transform_1, window_bounds = array<i64: 8, 128>}, {transform_indices = @transform_2, window_bounds = array<i64: 8, 128>}]} {
    %c1_i32 = arith.constant 1 : i32
    %0 = arith.muli %arg0, %c1_i32 : i32
    %1 = arith.addi %0, %arg1 : i32
    %c0_i32 = arith.constant 0 : i32
    %2 = arith.cmpi eq, %arg1, %c0_i32 : i32
    %3 = arith.extui %2 : i1 to i32
    %c0_i32_0 = arith.constant 0 : i32
    %4 = arith.cmpi ne, %3, %c0_i32_0 : i32
    scf.if %4 {
      %cst = arith.constant 0.000000e+00 : f32
      %8 = vector.broadcast %cst : f32 to vector<8x128xf32>
      %c0 = arith.constant 0 : index
      %c0_3 = arith.constant 0 : index
      %9 = vector.load %arg4[%c0, %c0_3] : memref<8x128xf32, #tpu.memory_space<vmem>>, vector<8x128xf32>
      tpu.vector_store %arg4[%c0, %c0_3], %8 {strides = array<i32>} : memref<8x128xf32, #tpu.memory_space<vmem>>, vector<8x128xf32>,
    } else {
    }
    %c1_i32_1 = arith.constant 1 : i32
    %5 = arith.cmpi slt, %1, %c1_i32_1 : i32
    %6 = arith.extui %5 : i1 to i32
    %c0_i32_2 = arith.constant 0 : i32
    %7 = arith.cmpi ne, %6, %c0_i32_2 : i32
    scf.if %7 {
      %c0 = arith.constant 0 : index
      %c0_3 = arith.constant 0 : index
      %8 = vector.load %arg2[%c0, %c0_3] : memref<8x128xf32, #tpu.memory_space<vmem>>, vector<8x128xf32>
      %c0_4 = arith.constant 0 : index
      %c0_5 = arith.constant 0 : index
      %9 = vector.load %arg3[%c0_4, %c0_5] : memref<8x128xf32, #tpu.memory_space<vmem>>, vector<8x128xf32>
      %10 = arith.subf %8, %9 : vector<8x128xf32>
      %c0_6 = arith.constant 0 : index
      %c0_7 = arith.constant 0 : index
      %11 = vector.load %arg4[%c0_6, %c0_7] : memref<8x128xf32, #tpu.memory_space<vmem>>, vector<8x128xf32>
      %12 = arith.mulf %10, %10 : vector<8x128xf32>
      %13 = vector.shape_cast %12 : vector<8x128xf32> to vector<1x8x128xf32>
      %cst = arith.constant dense<0.000000e+00> : vector<8x128xf32>
      %14 = vector.multi_reduction <add>, %13, %cst [0] : vector<1x8x128xf32> to vector<8x128xf32>
      %15 = arith.addf %11, %14 : vector<8x128xf32>
      %c0_8 = arith.constant 0 : index
      %c0_9 = arith.constant 0 : index
      %16 = vector.load %arg4[%c0_8, %c0_9] : memref<8x128xf32, #tpu.memory_space<vmem>>, vector<8x128xf32>
      tpu.vector_store %arg4[%c0_8, %c0_9], %15 {strides = array<i32>} : memref<8x128xf32, #tpu.memory_space<vmem>>, vector<8x128xf32>,
    } else {
    }
    return
  }
  func.func @transform_0(%arg0: i32, %arg1: i32) -> (i32, i32) {
    %c1_i32 = arith.constant 1 : i32
    %0 = arith.muli %arg0, %c1_i32 : i32
    %1 = arith.addi %0, %arg1 : i32
    %c0_i32 = arith.constant 0 : i32
    %2 = arith.minsi %1, %c0_i32 : i32
    %c0_i32_0 = arith.constant 0 : i32
    %c0_i32_1 = arith.constant 0 : i32
    return %2, %c0_i32_0 : i32, i32
  }
  func.func @transform_1(%arg0: i32, %arg1: i32) -> (i32, i32) {
    %c1_i32 = arith.constant 1 : i32
    %0 = arith.muli %arg0, %c1_i32 : i32
    %1 = arith.addi %0, %arg1 : i32
    %c0_i32 = arith.constant 0 : i32
    %2 = arith.minsi %1, %c0_i32 : i32
    %c0_i32_0 = arith.constant 0 : i32
    %c0_i32_1 = arith.constant 0 : i32
    return %2, %c0_i32_0 : i32, i32
  }
  func.func @transform_2(%arg0: i32, %arg1: i32) -> (i32, i32) {
    %c0_i32 = arith.constant 0 : i32
    %c0_i32_0 = arith.constant 0 : i32
    return %arg0, %c0_i32 : i32, i32
  }
}

</mosaic_0001>

<llo_original>
// kernel: _lambda_.1
$region0: #{_lambda_.1}
  #allocation0 [shape = 'u32[]', space=smem, size = 0x4, offset = 0x4, fixed_abs, tag = 'smem constant byte address 0x4 - core index']
  #allocation1 [shape = 'u32[144,128]{1,0:T(1,128)}', space=vmem, size = 0x12000, scoped, tag = 'internal scratch']
  %s0 = inlined_call_operand.vmem [shape: f32[8,128], index: 0, kind: input, shape index: {}]
  %s1 = inlined_call_operand.vmem [shape: f32[8,128], index: 1, kind: input, shape index: {}]
  %s2 = inlined_call_operand.vmem [shape: f32[8,128], index: 2, kind: output, shape index: {}]
  %s3 = sld [smem:[#allocation0]]
  $region26: #{_lambda_.1} parent=0
    _
  %s5 = ssub.s32 1, %s3
  %s6 = scalar_select 0, %s5, %s3
  // Predicated region
  $region2: #{_lambda_.1} parent=0 // pred_check
    _
  $region3: #{_lambda_.1} parent=0 // pred_check_branch
    %8 = sbr.rel (0) target = $region5
  $region4: #{_lambda_.1} parent=0 // pred_region
    %s9 = sadd.s32 0, 0
    %p10 = scmp.lt.s32.totalorder %s9, 0
    %s11 = scalar_select %p10, %s9, 0
    %p12 = scmp.lt.s32.totalorder %s11, 0
    %s13 = scalar_select %p12, %s11, 0
    %s14 = smul.addr %s13, 8
    %s15 = scalar_lea.vmem %s0, %s14
    %s16 = sadd.s32 0, 0
    %p17 = scmp.lt.s32.totalorder %s16, 0
    %s18 = scalar_select %p17, %s16, 0
  $region5: #{_lambda_.1} parent=0 // pred_fallthru
    _
  // Predicated region
  $region6: #{_lambda_.1} parent=0 // pred_check
    _
  $region7: #{_lambda_.1} parent=0 // pred_check_branch
    %20 = sbr.rel (0) target = $region9
  $region8: #{_lambda_.1} parent=0 // pred_region
    %s21 = sadd.s32 0, 0
    %p22 = scmp.lt.s32.totalorder %s21, 0
    %s23 = scalar_select %p22, %s21, 0
    %p24 = scmp.lt.s32.totalorder %s23, 0
    %s25 = scalar_select %p24, %s23, 0
    %s26 = smul.addr %s25, 8
    %s27 = scalar_lea.vmem %s1, %s26
    %s28 = sadd.s32 0, 0
    %p29 = scmp.lt.s32.totalorder %s28, 0
    %s30 = scalar_select %p29, %s28, 0
  $region9: #{_lambda_.1} parent=0 // pred_fallthru
    _
  %s31 = sadd.s32 0, 0
  %p32 = scmp.lt.s32.totalorder %s31, 0
  %s33 = scalar_select %p32, %s31, 0
  %p34 = scmp.lt.s32.totalorder %s33, 0
  %s35 = scalar_select %p34, %s33, 0
  %s36 = smul.addr %s35, 8
  %s37 = scalar_lea.vmem %s0, %s36
  %s38 = sadd.s32 0, 0
  %p39 = scmp.lt.s32.totalorder %s38, 0
  %s40 = scalar_select %p39, %s38, 0
  %p41 = scmp.lt.s32.totalorder %s40, 0
  %s42 = scalar_select %p41, %s40, 0
  %s43 = smul.addr %s42, 8
  %s44 = scalar_lea.vmem %s1, %s43
  %s45 = sadd.s32 0, 0
  %p46 = scmp.lt.s32.totalorder %s45, 0
  %s47 = scalar_select %p46, %s45, 0
  %p48 = scmp.lt.s32.totalorder %s47, 0
  %s49 = scalar_select %p48, %s47, 0
  %s50 = smul.addr %s49, 8
  %s51 = scalar_lea.vmem %s0, %s50
  %s52 = sadd.s32 0, 0
  %p53 = scmp.lt.s32.totalorder %s52, 0
  %s54 = scalar_select %p53, %s52, 0
  %s55 = sadd.s32 0, 0
  %p56 = scmp.lt.s32.totalorder %s55, 0
  %s57 = scalar_select %p56, %s55, 0
  %p58 = scmp.lt.s32.totalorder %s57, 0
  %s59 = scalar_select %p58, %s57, 0
  %s60 = smul.addr %s59, 8
  %s61 = scalar_lea.vmem %s1, %s60
  %s62 = sadd.s32 0, 0
  %p63 = scmp.lt.s32.totalorder %s62, 0
  %s64 = scalar_select %p63, %s62, 0
  %s65 = sadd.s32 0, 0
  %p66 = scmp.eq.s32.totalorder 0, 0
  // Predicated region
  $region10: #{_lambda_.1} parent=0 // pred_check
    %p67 = pneg %p66
  $region11: #{_lambda_.1} parent=0 // pred_check_branch
    %69 = sbr.rel (%p67) target = $region13
  $region12: #{_lambda_.1} parent=0 // pred_region
    %70 = vst [vmem:[%s2] sm:$0xff] 0.0
  $region13: #{_lambda_.1} parent=0 // pred_fallthru
    _
  %p71 = scmp.lt.s32.totalorder %s65, 1
  // Predicated region
  $region14: #{_lambda_.1} parent=0 // pred_check
    %p72 = pneg %p71
  $region15: #{_lambda_.1} parent=0 // pred_check_branch
    %74 = sbr.rel (%p72) target = $region17
  $region16: #{_lambda_.1} parent=0 // pred_region
    %v75 = vld [vmem:[%s51] sm:$0xff]
    %v76 = vld [vmem:[%s61] sm:$0xff]
    %v77 = vsub.f32 %v75, %v76
    %v78 = vld [vmem:[%s2] sm:$0xff]
    %v79 = vmul.f32 %v77, %v77
    %v80 = vadd.f32 %v79, 0.0
    %v81 = vadd.f32 %v78, %v80
    %82 = vst [vmem:[%s2] sm:$0xff] %v81
  $region17: #{_lambda_.1} parent=0 // pred_fallthru
    _
  // Predicated region
  $region18: #{_lambda_.1} parent=0 // pred_check
    _
  $region19: #{_lambda_.1} parent=0 // pred_check_branch
    %84 = sbr.rel (0) target = $region21
  $region20: #{_lambda_.1} parent=0 // pred_region
    _
  $region21: #{_lambda_.1} parent=0 // pred_fallthru
    _
  // Predicated region
  $region22: #{_lambda_.1} parent=0 // pred_check
    _
  $region23: #{_lambda_.1} parent=0 // pred_check_branch
    %86 = sbr.rel (0) target = $region25
  $region24: #{_lambda_.1} parent=0 // pred_region
    _
  $region25: #{_lambda_.1} parent=0 // pred_fallthru
    _

</llo_original>
